<compile_context>
chip_gen: v7x
topology: tpu7x:2x2x1
jax: 0.10.0
libtpu: 0.0.40
codegen_flags: <defaults>
</compile_context>

<pallas_src>
import functools

import jax
import jax.numpy as jnp
from jax.experimental import pallas as pl
from jax.experimental.pallas import tpu as pltpu


def _cdiv(a, b):
    return (a + b - 1) // b


def _lrn_kernel(*refs, local_size, coeff, beta, use_band):
    """Block shapes: band (C, C) [only if use_band], x/o (nb, C, T)."""
    if use_band:
        band_ref, x_ref, o_ref = refs
        band = band_ref[...]
    else:
        x_ref, o_ref = refs

    nb, C, _ = x_ref.shape
    pad = (local_size - 1) // 2

    if (not use_band) and local_size > 1:
        # Channel-index column used to zero the wrapped-around rows of each roll.
        ch = jax.lax.broadcasted_iota(jnp.int32, (C, 1), 0)

    for b in range(nb):                        # nb is a small compile-time constant
        x = x_ref[b].astype(jnp.float32)       # (C, T); bf16 inputs upcast for compute
        sq = x * x

        if local_size == 1:
            wsum = sq
        elif use_band:
            # Cross-channel sliding sum as a banded matmul on the otherwise-idle
            # MXU. `band` lives in VMEM for the whole grid (hoisted to wrapper).
            wsum = jnp.dot(band, sq, preferred_element_type=jnp.float32)
        else:
            # Large-C path: (local_size-1) rolls + masks + adds on XLU/VPU slots.
            wsum = sq
            for d in range(-pad, local_size - pad):
                if d == 0:
                    continue
                # shifted[i] = sq[(i + d) % C]; mask drops the wrap-around rows
                # so the window is zero-padded across channels like AvgPool3d.
                shifted = pltpu.roll(sq, shift=(-d) % C, axis=0)
                valid = (ch + d >= 0) & (ch + d < C)
                wsum = wsum + jnp.where(valid, shifted, 0.0)

        # t = avg_pool * alpha + 1 = window_sum * (alpha / local_size) + 1
        t = wsum * coeff + 1.0

        if beta == 0.0:
            inv = jnp.ones_like(t)
        elif coeff >= 0.0 and beta == 0.5:
            inv = jax.lax.rsqrt(t)                       # t^-1/2
        elif coeff >= 0.0 and beta == 0.75:
            r = jax.lax.rsqrt(t)                         # t^-1/2
            inv = r * jax.lax.rsqrt(t * r)               # t^-1/2 * (t^1/2)^-1/2 = t^-3/4
        elif coeff >= 0.0 and beta == 1.0:
            inv = pl.reciprocal(t, approx=True)          # single EUP op
        else:
            # Generic path; NaN for t <= 0 (alpha < 0) matches torch.pow.
            inv = jnp.exp(-beta * jnp.log(t))

        o_ref[b] = (x * inv).astype(o_ref.dtype)


def lrn(x, local_size=1, alpha=1.0, beta=0.75):
    """x: (N, C, H, W), float32 or bfloat16. Returns same shape/dtype."""
    N, C, H, W = x.shape
    HW = H * W
    x_flat = x.reshape(N, C, HW)               # contiguous merge; no HBM copy

    LANE = 128
    MAX_LANE_CHUNKS = 8                        # up to 1024 lanes per grid step
    BLOCK_BYTE_TARGET = 2 * 1024 * 1024        # per-image-block f32 working-set cap

    hw_chunks = _cdiv(HW, LANE)                # H*W measured in 128-lane chunks
    cap = max(1, (BLOCK_BYTE_TARGET // (C * 4)) // LANE)
    cpt = max(1, min(hw_chunks, MAX_LANE_CHUNKS, cap))
    # v7x megacore: keep >= 2 parallel grid steps when N == 1 if we can.
    if N == 1 and hw_chunks > 1 and _cdiv(hw_chunks, cpt) == 1:
        cpt = _cdiv(hw_chunks, 2)
    t_hw = cpt * LANE                          # multiple of 128 -> lane-dense blocks
    n_hw = _cdiv(hw_chunks, cpt)               # partial final tile handled by Pallas

    # Pack several small images per block (nb divides N; keep >= 2 steps along N).
    if n_hw == 1 and N > 1:
        per_img = C * t_hw * 4
        nb = max(1, min(N // 2, BLOCK_BYTE_TARGET // per_img))
        while N % nb:
            nb -= 1
    else:
        nb = 1

    # MXU banded matmul for modest C; roll-based shifted adds for large C
    # (fp32 matmul stops being free on v5e / large C on v6e).
    use_band = (local_size > 1) and (C <= 128 or C % 8 != 0)

    kernel = functools.partial(
        _lrn_kernel,
        local_size=int(local_size),
        coeff=float(alpha) / float(local_size),
        beta=float(beta),
        use_band=use_band,
    )

    in_specs = []
    operands = []
    if use_band:
        pad = (local_size - 1) // 2
        delta = jnp.arange(C)[None, :] - jnp.arange(C)[:, None]
        band = ((delta >= -pad) & (delta <= local_size - 1 - pad)).astype(jnp.float32)
        # Constant block index -> fetched once, VMEM-resident for the whole grid.
        in_specs.append(pl.BlockSpec((C, C), lambda n, h: (0, 0)))
        operands.append(band)

    in_specs.append(pl.BlockSpec((nb, C, t_hw), lambda n, h: (n, 0, h)))
    operands.append(x_flat)
    out_spec = pl.BlockSpec((nb, C, t_hw), lambda n, h: (n, 0, h))

    itemsize = jnp.dtype(x.dtype).itemsize
    win_flops = 2 * C if use_band else 2 * local_size
    cost = pl.CostEstimate(
        flops=int(N * C * HW * (win_flops + 8)),
        transcendentals=int(2 * N * C * HW),
        bytes_accessed=int(2 * N * C * HW * itemsize),
    )

    out_flat = pl.pallas_call(
        kernel,
        out_shape=jax.ShapeDtypeStruct((N, C, HW), x.dtype),
        grid_spec=pltpu.PrefetchScalarGridSpec(
            num_scalar_prefetch=0,
            grid=(N // nb, n_hw),
            in_specs=in_specs,
            out_specs=out_spec,
        ),
        compiler_params=pltpu.CompilerParams(
            dimension_semantics=("parallel", "parallel"),
            vmem_limit_bytes=32 * 1024 * 1024,
        ),
        cost_estimate=cost,
    )(*operands)

    return out_flat.reshape(N, C, H, W)


def lrn_ref(x, local_size=1, alpha=1.0, beta=0.75):
    """Pure-JAX reference mirroring the PyTorch module (ACROSS_CHANNELS=True)."""
    N, C, H, W = x.shape
    pad = (local_size - 1) // 2
    sq = x * x
    sq_p = jnp.pad(sq, ((0, 0), (pad, local_size - 1 - pad), (0, 0), (0, 0)))
    win = sum(sq_p[:, d:d + C] for d in range(local_size))
    avg = win / local_size
    div = jnp.power(avg * alpha + 1.0, beta)
    return x / div


if __name__ == "__main__":
    keys = jax.random.split(jax.random.PRNGKey(0), 6)

    def check(x, local_size, alpha, beta, atol=1e-5, rtol=1e-5):
        out = jax.block_until_ready(lrn(x, local_size=local_size, alpha=alpha, beta=beta))
        ref = lrn_ref(x.astype(jnp.float32), local_size=local_size, alpha=alpha, beta=beta)
        assert out.shape == x.shape and out.dtype == x.dtype
        err = jnp.max(jnp.abs(out.astype(jnp.float32) - ref))
        assert jnp.allclose(out.astype(jnp.float32), ref, atol=atol, rtol=rtol), \
            (local_size, alpha, beta, float(err))

    # 1) Module defaults (local_size=1): rsqrt(beta=0.75) path, no channel window.
    x = jax.random.normal(keys[0], (2, 4, 16, 16), dtype=jnp.float32)
    check(x, 1, 1.0, 0.75)

    # 2) Cross-channel window via hoisted banded matmul (C <= 128).
    check(x, 3, 2.0, 0.75)

    # 3) Ragged spatial (7x7 < 128 lanes, partial block) + beta=0.5 rsqrt path.
    x2 = jax.random.normal(keys[1], (2, 6, 7, 7), dtype=jnp.float32)
    check(x2, 5, 1e-3, 0.5)

    # 4) Small H*W: several images packed per block + generic exp/log path.
    x3 = jax.random.normal(keys[2], (8, 4, 8, 8), dtype=jnp.float32)
    check(x3, 3, 1.5, 0.9)

    # 5) Large C (> 128): roll-based sliding window (no banded matmul).
    x4 = jax.random.normal(keys[3], (2, 256, 6, 6), dtype=jnp.float32)
    check(x4, 5, 2.0, 0.75)

    # 6) N=1 with multiple lane tiles and a partial final tile (35*35 = 1225).
    x5 = jax.random.normal(keys[4], (1, 8, 35, 35), dtype=jnp.float32)
    check(x5, 5, 1.0, 0.75)

    # 7) bf16 in/out (f32 compute inside the kernel).
    x6 = jax.random.normal(keys[5], (2, 8, 16, 16), dtype=jnp.bfloat16)
    check(x6, 5, 1.0, 0.75, atol=2e-2, rtol=2e-2)

    print("KERNEL_OK")
</pallas_src>

<mosaic_0001>
module attributes {stable_mosaic.version = 11 : i64} {
  func.func @_lrn_kernel(%arg0: i32, %arg1: i32, %arg2: memref<1x4x256xf32, #tpu.memory_space<vmem>>, %arg3: memref<1x4x256xf32, #tpu.memory_space<vmem>>) attributes {dimension_semantics = [#tpu.dimension_semantics<parallel>, #tpu.dimension_semantics<parallel>], iteration_bounds = array<i64: 2, 1>, scalar_prefetch = 0 : i64, scratch_operands = 0 : i64, tpu.core_type = #tpu.core_type<tc>, window_params = [{transform_indices = @transform_0, window_bounds = array<i64: 1, 4, 256>}, {transform_indices = @transform_1, window_bounds = array<i64: 1, 4, 256>}]} {
    %c0 = arith.constant 0 : index
    %c0_0 = arith.constant 0 : index
    %c0_1 = arith.constant 0 : index
    %0 = vector.load %arg2[%c0, %c0_0, %c0_1] : memref<1x4x256xf32, #tpu.memory_space<vmem>>, vector<1x4x256xf32>
    %1 = vector.shape_cast %0 : vector<1x4x256xf32> to vector<4x256xf32>
    %2 = arith.mulf %1, %1 : vector<4x256xf32>
    %cst = arith.constant 1.000000e+00 : f32
    %3 = vector.broadcast %cst : f32 to vector<4x256xf32>
    %4 = arith.mulf %2, %3 : vector<4x256xf32>
    %cst_2 = arith.constant 1.000000e+00 : f32
    %5 = vector.broadcast %cst_2 : f32 to vector<4x256xf32>
    %6 = arith.addf %4, %5 : vector<4x256xf32>
    %7 = math.rsqrt %6 : vector<4x256xf32>
    %8 = arith.mulf %6, %7 : vector<4x256xf32>
    %9 = math.rsqrt %8 : vector<4x256xf32>
    %10 = arith.mulf %7, %9 : vector<4x256xf32>
    %11 = arith.mulf %1, %10 : vector<4x256xf32>
    %c0_3 = arith.constant 0 : index
    %c0_4 = arith.constant 0 : index
    %c0_5 = arith.constant 0 : index
    %12 = vector.load %arg3[%c0_3, %c0_4, %c0_5] : memref<1x4x256xf32, #tpu.memory_space<vmem>>, vector<1x4x256xf32>
    %13 = vector.shape_cast %12 : vector<1x4x256xf32> to vector<4x256xf32>
    %14 = vector.shape_cast %11 : vector<4x256xf32> to vector<1x4x256xf32>
    tpu.vector_store %arg3[%c0_3, %c0_4, %c0_5], %14 {strides = array<i32>} : memref<1x4x256xf32, #tpu.memory_space<vmem>>, vector<1x4x256xf32>,
    return
  }
  func.func @transform_0(%arg0: i32, %arg1: i32) -> (i32, i32, i32) {
    %c0_i32 = arith.constant 0 : i32
    %c0_i32_0 = arith.constant 0 : i32
    return %arg0, %c0_i32, %arg1 : i32, i32, i32
  }
  func.func @transform_1(%arg0: i32, %arg1: i32) -> (i32, i32, i32) {
    %c0_i32 = arith.constant 0 : i32
    %c0_i32_0 = arith.constant 0 : i32
    return %arg0, %c0_i32, %arg1 : i32, i32, i32
  }
}

</mosaic_0001>

<llo_original>
// kernel: tpu_custom_call.1
$region0: #{tpu_custom_call.1}
  #allocation0 [shape = 'u32[]', space=smem, size = 0x4, offset = 0x4, fixed_abs, tag = 'smem constant byte address 0x4 - core index']
  #allocation1 [shape = 'u32[144,128]{1,0:T(1,128)}', space=vmem, size = 0x12000, scoped, tag = 'internal scratch']
  %s0 = inlined_call_operand.hbm [shape: f32[2,4,256], index: 0, kind: input, shape index: {}]
  %s1 = inlined_call_operand.hbm [shape: f32[2,4,256], index: 1, kind: output, shape index: {}]
  %s2 = sld [smem:[#allocation0]]
  $region41: #{tpu_custom_call.1} parent=0
    _
  %s4 = ssub.s32 1, %s2
  %s5 = scalar_select 0, %s4, %s2
  $region1: #{tpu_custom_call.1} parent=0
    #allocation2 [shape = 'u8[8192]{0}', space=vmem, size = 0x2000, scoped, tag = 'input window, operand 0']
    #allocation3 [shape = 's32[2]{0}', space=sflag, size = 0x8, scoped, tag = 'scoped memory for tpu_custom_call.1']
    #allocation4 [shape = 's32[2]{0}', space=sflag, size = 0x8, scoped, tag = 'scoped memory for tpu_custom_call.1']
    #allocation5 [shape = 'u8[8192]{0}', space=vmem, size = 0x2000, scoped, tag = 'output window, operand 0']
    %6 = vsyncpa [#allocation3], 0
    %s7 = scalar_lea.sflag [#allocation3], 1
    %8 = vsyncpa %s7, 0
    %9 = vsyncpa [#allocation4], 0
    %s10 = scalar_lea.sflag [#allocation4], 1
    %11 = vsyncpa %s10, 0
    loop: start=0, step=1, limit=4
    $region2: #{tpu_custom_call.1} parent=1 // loop_pre_header
      _
    $region3: #{tpu_custom_call.1} parent=1 // loop_header
      %s13 = sphi 0, %s17
      %p14 = scmp.ge.s32.totalorder %s13, 4
      %s20 = sphi 0, %s32
      %s21 = sphi 0, %s28
      %s22 = sphi 0, %s20
      %s23 = sphi 0, %s21
      %s24 = sphi 0, %s22
      %s25 = sphi 0, %s23
      %s37 = sphi 0, %s39
      %s40 = sphi 0, %s37
      %s41 = sphi 0, %s40
      %s57 = sphi 0, %s41
      %s65 = sphi 0, %s67
      %s68 = sphi 0, %s65
      %s69 = sphi 0, %s68
      %s85 = sphi 0, %s69
    $region4: #{tpu_custom_call.1} parent=1 // loop_header_branch
      %16 = sbr.rel (%p14) target = $region8
    $region5: #{tpu_custom_call.1} parent=1 // loop_body
      %s18 = ssub.s32 %s13, 1
      %s19 = ssub.s32 %s13, 2
      %s26 = sadd.s32 1, %s21
      %p27 = scmp.ge.s32.totalorder %s26, 1
      %s28 = scalar_select %p27, 0, %s26
      %s29 = sadd.s32 1, %s20
      %s30 = scalar_select %p27, %s29, %s20
      %p31 = scmp.ge.s32.totalorder %s30, 2
      %s32 = scalar_select %p31, 0, %s30
      %s33 = ssub.s32 %s20, %s32
      %s34 = ssub.s32 %s21, %s28
      %s35 = sor.u32 %s33, %s34
      %p36 = scmp.eq.s32.totalorder %s35, 0
      %s38 = sadd.s32 %s37, 1
      %s39 = scalar_select %p36, %s37, %s38
      %p42 = pneg %p36
      %p43 = scmp.eq.s32.totalorder %s13, 1
      %p44 = por %p42, %p43
      %p45 = scmp.ne.s32.totalorder %s37, %s40
      %p46 = scmp.eq.s32.totalorder %s13, 0
      %p47 = por %p45, %p46
      %p48 = scmp.ne.s32.totalorder %s37, %s40
      %p49 = scmp.eq.s32.totalorder %s18, 1
      %p50 = por %p48, %p49
      %p51 = scmp.ne.s32.totalorder %s40, %s41
      %p52 = scmp.eq.s32.totalorder %s18, 0
      %p53 = por %p51, %p52
      %p54 = scmp.ne.s32.totalorder %s40, %s41
      %p55 = scmp.eq.s32.totalorder %s19, 1
      %p56 = por %p54, %p55
      %p58 = scmp.ne.s32.totalorder %s41, %s57
      %p59 = scmp.eq.s32.totalorder %s19, 0
      %p60 = por %p58, %p59
      %s61 = ssub.s32 %s20, %s32
      %s62 = ssub.s32 %s21, %s28
      %s63 = sor.u32 %s61, %s62
      %p64 = scmp.eq.s32.totalorder %s63, 0
      %s66 = sadd.s32 %s65, 1
      %s67 = scalar_select %p64, %s65, %s66
      %p70 = pneg %p64
      %p71 = scmp.eq.s32.totalorder %s13, 1
      %p72 = por %p70, %p71
      %p73 = scmp.ne.s32.totalorder %s65, %s68
      %p74 = scmp.eq.s32.totalorder %s13, 0
      %p75 = por %p73, %p74
      %p76 = scmp.ne.s32.totalorder %s65, %s68
      %p77 = scmp.eq.s32.totalorder %s18, 1
      %p78 = por %p76, %p77
      %p79 = scmp.ne.s32.totalorder %s68, %s69
      %p80 = scmp.eq.s32.totalorder %s18, 0
      %p81 = por %p79, %p80
      %p82 = scmp.ne.s32.totalorder %s68, %s69
      %p83 = scmp.eq.s32.totalorder %s19, 1
      %p84 = por %p82, %p83
      %p86 = scmp.ne.s32.totalorder %s69, %s85
      %p87 = scmp.eq.s32.totalorder %s19, 0
      %p88 = por %p86, %p87
      %p89 = scmp.le.s32.totalorder 1, %s13
      %p90 = scmp.lt.s32.totalorder %s13, 3
      %p91 = pnand %p89, %p90
      %p92 = pneg %p91
      // Predicated region
      $region9: #{tpu_custom_call.1} parent=5 // pred_check
        _
      $region10: #{tpu_custom_call.1} parent=5 // pred_check_branch
        %94 = sbr.rel (%p91) target = $region12
      $region11: #{tpu_custom_call.1} parent=5 // pred_region
        %s95 = ssub.s32 %s13, 1
      $region12: #{tpu_custom_call.1} parent=5 // pred_fallthru
        _
      %p96 = scmp.lt.s32.totalorder %s13, 2
      // Predicated region
      $region13: #{tpu_custom_call.1} parent=5 // pred_check
        %p97 = pneg %p96
      $region14: #{tpu_custom_call.1} parent=5 // pred_check_branch
        %99 = sbr.rel (%p97) target = $region16
      $region15: #{tpu_custom_call.1} parent=5 // pred_region
        // Predicated region
        $region17: #{tpu_custom_call.1} parent=15 // pred_check
          %p100 = pneg %p47
        $region18: #{tpu_custom_call.1} parent=15 // pred_check_branch
          %102 = sbr.rel (%p100) target = $region20
        $region19: #{tpu_custom_call.1} parent=15 // pred_region
          %s103 = sand.u32 %s37, 1
          %s104 = scalar_lea.sflag [#allocation3], %s103
          %s105 = sand.u32 %s37, 1
          %s106 = smul.addr %s105, 8
          %s107 = scalar_lea.vmem [#allocation2], %s106
          %s108 = smul.u32 2, %s21
          %s110 = ssub.s32 128, 128
          %111 = vsyncadd %s104, %s110
          %s112 = smul.addr %s20, 2
          %s113 = sadd.s32 %s108, %s112
          %s114 = smul.addr %s113, 64
          %s115 = scalar_lea.hbm %s0, %s114
          %s117 = sshll.u32 %s107, 4
          %s118 = int_to_ptr.vmem [resolvable:$true] %s117
          %120 = dma.hbm_to_vmem [thread:$0]  %s115, 128, %s118, %s104
        $region20: #{tpu_custom_call.1} parent=15 // pred_fallthru
          _
      $region16: #{tpu_custom_call.1} parent=5 // pred_fallthru
        _
      %p121 = scmp.le.s32.totalorder 1, %s13
      %p122 = scmp.lt.s32.totalorder %s13, 3
      %p123 = pnand %p121, %p122
      %p124 = pneg %p123
      // Predicated region
      $region21: #{tpu_custom_call.1} parent=5 // pred_check
        _
      $region22: #{tpu_custom_call.1} parent=5 // pred_check_branch
        %126 = sbr.rel (%p123) target = $region24
      $region23: #{tpu_custom_call.1} parent=5 // pred_region
        %s127 = ssub.s32 %s13, 1
        %s128 = sand.u32 %s40, 1
        %s129 = scalar_lea.sflag [#allocation3], %s128
        %s130 = sand.u32 %s40, 1
        %s131 = smul.addr %s130, 8
        %s132 = scalar_lea.vmem [#allocation2], %s131
        // Predicated region
        $region25: #{tpu_custom_call.1} parent=23 // pred_check
          %p133 = pneg %p53
        $region26: #{tpu_custom_call.1} parent=23 // pred_check_branch
          %135 = sbr.rel (%p133) target = $region28
        $region27: #{tpu_custom_call.1} parent=23 // pred_region
          %136 = dma.done %s129, 128
        $region28: #{tpu_custom_call.1} parent=23 // pred_fallthru
          _
        %s137 = sand.u32 %s40, 1
        %s138 = scalar_lea.sflag [#allocation3], %s137
        %s139 = sand.u32 %s40, 1
        %s140 = smul.addr %s139, 8
        %s141 = scalar_lea.vmem [#allocation2], %s140
        %p142 = pneg %p53
        %p143 = pneg %p50
        %p144 = pneg %p81
        %p145 = pneg %p78
        %s146 = sand.u32 %s68, 1
        %s147 = scalar_lea.sflag [#allocation4], %s146
        %s148 = sand.u32 %s68, 1
        %s149 = smul.addr %s148, 8
        %s150 = scalar_lea.vmem [#allocation5], %s149
        %s151 = smul.u32 2, %s23
        %s152 = smul.u32 2, %s23
        %v153 = vld [vmem:[%s132] sm:$0xff]
        %v154 = vmul.f32 %v153, %v153
        %v155 = vadd.f32 %v154, 1.0
        %v156 = vrsqrt.pop %v155
        %v157 = vmul.f32 %v155, %v156
        %v158 = vrsqrt.pop %v157
        %v159 = vmul.f32 %v156, %v158
        %v160 = vmul.f32 %v153, %v159
        %161 = vst [vmem:[%s150] sm:$0xff] %v160
        %s162 = sand.u32 %s68, 1
        %s163 = scalar_lea.sflag [#allocation4], %s162
        %s164 = sand.u32 %s68, 1
        %s165 = smul.addr %s164, 8
        %s166 = scalar_lea.vmem [#allocation5], %s165
        // Predicated region
        $region29: #{tpu_custom_call.1} parent=23 // pred_check
          %p167 = pneg %p78
        $region30: #{tpu_custom_call.1} parent=23 // pred_check_branch
          %169 = sbr.rel (%p167) target = $region32
        $region31: #{tpu_custom_call.1} parent=23 // pred_region
          %s170 = smul.u32 2, %s23
          %s172 = ssub.s32 128, 128
          %173 = vsyncadd %s163, %s172
          %s174 = smul.addr %s22, 2
          %s175 = sadd.s32 %s170, %s174
          %s176 = smul.addr %s175, 64
          %s177 = scalar_lea.hbm %s1, %s176
          %s179 = sshll.u32 %s166, 4
          %s180 = int_to_ptr.vmem [resolvable:$true] %s179
          %182 = dma.vmem_to_hbm [thread:$0]  %s180, 128, %s177, %s163
        $region32: #{tpu_custom_call.1} parent=23 // pred_fallthru
          _
      $region24: #{tpu_custom_call.1} parent=5 // pred_fallthru
        _
      %p183 = scmp.le.s32.totalorder 2, %s13
      // Predicated region
      $region33: #{tpu_custom_call.1} parent=5 // pred_check
        %p184 = pneg %p183
      $region34: #{tpu_custom_call.1} parent=5 // pred_check_branch
        %186 = sbr.rel (%p184) target = $region36
      $region35: #{tpu_custom_call.1} parent=5 // pred_region
        %s187 = ssub.s32 %s13, 2
        // Predicated region
        $region37: #{tpu_custom_call.1} parent=35 // pred_check
          %p188 = pneg %p84
        $region38: #{tpu_custom_call.1} parent=35 // pred_check_branch
          %190 = sbr.rel (%p188) target = $region40
        $region39: #{tpu_custom_call.1} parent=35 // pred_region
          %s191 = sand.u32 %s69, 1
          %s192 = scalar_lea.sflag [#allocation4], %s191
          %s193 = sand.u32 %s69, 1
          %s194 = smul.addr %s193, 8
          %s195 = scalar_lea.vmem [#allocation5], %s194
          %196 = dma.done %s192, 128
        $region40: #{tpu_custom_call.1} parent=35 // pred_fallthru
          _
      $region36: #{tpu_custom_call.1} parent=5 // pred_fallthru
        _
    $region6: #{tpu_custom_call.1} parent=1 // loop_footer
      %s17 = sadd.s32 1, %s13
    $region7: #{tpu_custom_call.1} parent=1 // loop_footer_branch
      %12 = sbr.rel target = $region3
    $region8: #{tpu_custom_call.1} parent=1 // loop_exit
      _
    %197 = vsyncpa [#allocation3], 1
    %s198 = scalar_lea.sflag [#allocation3], 1
    %199 = vsyncpa %s198, 1
    %200 = vsyncpa [#allocation4], 1
    %s201 = scalar_lea.sflag [#allocation4], 1
    %202 = vsyncpa %s201, 1

</llo_original>
